<compile_context>
chip_gen: v5e
topology: v5e:2x2
jax: 0.10.0
libtpu: 0.0.40
codegen_flags: <defaults>
</compile_context>

<pallas_src>
import functools
import math
import numpy as np
import jax
import jax.numpy as jnp
from jax.experimental import pallas as pl
from jax.experimental.pallas import tpu as pltpu

# NOTE: NEG_INF is intentionally a *finite* large negative so that padded
# examples (whole candidate column masked) still produce a finite LSE which is
# then zeroed by the `valid` mask.  Using -inf would give inf*0 = NaN.
NEG_INF = -1e30
LANE = 128        # examples per 128-lane sub-block
MAX_SUB = 4       # up to 4 * 128 = 512 examples per grid step


def _choose_sub(lanes):
    """Pick sub-blocks per grid step: big steps, but keep grid >= 2 if possible
    (v7x has 2 TensorCores sharding the 'parallel' grid axis)."""
    sub = min(MAX_SUB, lanes)
    while sub > 1 and (lanes % sub != 0 or lanes // sub < 2):
        sub -= 1
    return sub


# ---- Kernel A: segment-mean pooling, blocked over batch ----------------------
def _pool_kernel(w_ref, x_ref, pooled_ref):
    # one batch element per grid step: (T, S) @ (S, D) -> (T, D)
    pooled_ref[0] = jnp.dot(w_ref[0], x_ref[0],
                            preferred_element_type=jnp.float32)


def pool_turns(pool_w, enc):
    B, T, S = pool_w.shape
    D = enc.shape[-1]
    return pl.pallas_call(
        _pool_kernel,
        out_shape=jax.ShapeDtypeStruct((B, T, D), jnp.float32),
        grid=(B,),
        in_specs=[pl.BlockSpec((1, T, S), lambda b: (b, 0, 0)),
                  pl.BlockSpec((1, S, D), lambda b: (b, 0, 0))],
        out_specs=pl.BlockSpec((1, T, D), lambda b: (b, 0, 0)),
        compiler_params=pltpu.CompilerParams(
            dimension_semantics=("parallel",)),
    )(pool_w, enc)


# ---- Kernel B: batched 2-step LSTM + con_fc scoring + CE(target=0) ----------
def _dli_kernel(x0_ref, x1_ref, cand_ref, valid_ref,
                wih_ref, whh_ref, b_ref, wh_ref, loss_ref, *, hidden, sub):
    H = hidden
    wih = wih_ref[...]                       # (4H, E)  bf16
    whh = whh_ref[...]                       # (4H, H)  bf16
    b = b_ref[...]                           # (4H, 1)  f32
    wh = wh_ref[...]                         # (H, 1)   f32

    def sig(x):
        # sigmoid via a single EUP tanh (avoids an exp + reciprocal lowering)
        return 0.5 * (jnp.tanh(0.5 * x) + 1.0)

    # static inner loop over 128-lane sub-blocks (bounds vreg pressure while
    # amortizing the per-grid-step overhead over sub*128 examples)
    for s in range(sub):
        lo = s * LANE
        x0 = x0_ref[:, lo:lo + LANE]         # (E, 128) bf16
        x1 = x1_ref[:, lo:lo + LANE]
        # fused W_ih push for both time steps: (4H, E) @ (E, 256) -> f32
        g01 = jnp.dot(wih, jnp.concatenate([x0, x1], axis=1),
                      preferred_element_type=jnp.float32)

        # step 1 (h0 = c0 = 0; forget gate irrelevant) — PyTorch order i,f,g,o
        g1 = g01[:, :LANE] + b
        i1 = sig(g1[0:H, :])
        gg1 = jnp.tanh(g1[2 * H:3 * H, :])
        o1 = sig(g1[3 * H:4 * H, :])
        c1 = i1 * gg1
        h1 = o1 * jnp.tanh(c1)               # (H, 128) f32

        # step 2
        g2 = (g01[:, LANE:] + b
              + jnp.dot(whh, h1.astype(jnp.bfloat16),
                        preferred_element_type=jnp.float32))
        i2 = sig(g2[0:H, :])
        f2 = sig(g2[H:2 * H, :])
        gg2 = jnp.tanh(g2[2 * H:3 * H, :])
        o2 = sig(g2[3 * H:4 * H, :])
        c2 = f2 * c1 + i2 * gg2
        h2 = o2 * jnp.tanh(c2)               # (H, 128) f32

        # con_fc([h2 ; cand_k]) = w_h.h2 + (w_t.cand_k + b_fc); the candidate
        # half (with the pad mask folded in) arrives precomputed in cand_ref.
        s_h = jnp.sum(h2 * wh, axis=0, keepdims=True)        # (1, 128)
        logits = cand_ref[:, lo:lo + LANE] + s_h             # (Cmax_pad, 128)

        # cross-entropy with target index 0 (candidates on the sublane axis)
        m = jnp.max(logits, axis=0, keepdims=True)
        lse = m + jnp.log(jnp.sum(jnp.exp(logits - m), axis=0, keepdims=True))
        loss = lse - logits[0:1, :]                          # (1, 128)
        loss_ref[:, lo:lo + LANE] = loss * valid_ref[:, lo:lo + LANE]


def dli_losses(x0t, x1t, candT, valid, wih, whh, b, wh, *, hidden, sub):
    E, n_pad = x0t.shape
    cp = candT.shape[0]
    h4, h = whh.shape
    block_n = sub * LANE
    num_tiles = n_pad // block_n
    kernel = functools.partial(_dli_kernel, hidden=hidden, sub=sub)
    return pl.pallas_call(
        kernel,
        out_shape=jax.ShapeDtypeStruct((1, n_pad), jnp.float32),
        grid=(num_tiles,),
        in_specs=[
            pl.BlockSpec((E, block_n), lambda t: (0, t)),    # src turn 0 (bf16)
            pl.BlockSpec((E, block_n), lambda t: (0, t)),    # src turn 1 (bf16)
            pl.BlockSpec((cp, block_n), lambda t: (0, t)),   # cand scores+mask
            pl.BlockSpec((1, block_n), lambda t: (0, t)),    # example validity
            pl.BlockSpec((h4, E), lambda t: (0, 0)),         # W_ih (bf16)
            pl.BlockSpec((h4, h), lambda t: (0, 0)),         # W_hh (bf16)
            pl.BlockSpec((h4, 1), lambda t: (0, 0)),         # b_ih + b_hh
            pl.BlockSpec((h, 1), lambda t: (0, 0)),          # con_fc w (lstm part)
        ],
        out_specs=pl.BlockSpec((1, block_n), lambda t: (0, t)),
        compiler_params=pltpu.CompilerParams(
            dimension_semantics=("parallel",)),
    )(x0t, x1t, candT, valid, wih, whh, b, wh)


# ------------------------------ Module wrapper --------------------------------
class DLILoss2:
    def __init__(self, enc_dim, lstm_hid, ffn_hid_dim, key):
        self.enc_dim = enc_dim
        self.lstm_hid = lstm_hid
        self.ffn_hid_dim = ffn_hid_dim  # unused in forward (as in the original)
        k = jax.random.split(key, 6)
        s_lstm = 1.0 / math.sqrt(lstm_hid)
        u = lambda kk, shape, s: jax.random.uniform(kk, shape, jnp.float32, -s, s)
        # PyTorch nn.LSTM parameter shapes
        self.w_ih = u(k[0], (4 * lstm_hid, enc_dim), s_lstm)
        self.w_hh = u(k[1], (4 * lstm_hid, lstm_hid), s_lstm)
        self.b_ih = u(k[2], (4 * lstm_hid,), s_lstm)
        self.b_hh = u(k[3], (4 * lstm_hid,), s_lstm)
        # nn.Linear(lstm_hid + enc_dim, 1)
        s_fc = 1.0 / math.sqrt(lstm_hid + enc_dim)
        self.fc_w = u(k[4], (1, lstm_hid + enc_dim), s_fc)
        self.fc_b = u(k[5], (1,), s_fc)

    def __call__(self, encoder_output, his_turn_end_ids):
        bsz, S, D = encoder_output.shape
        H = self.lstm_hid
        turn_lengths = [len(e) for e in his_turn_end_ids]
        T = max(turn_lengths)
        if T <= 2:
            return jnp.zeros((), jnp.float32)

        # ---- turn mean-pooling weights (static, numpy) ----
        pool_w = np.zeros((bsz, T, S), np.float32)
        for i in range(bsz):
            ends = list(his_turn_end_ids[i])
            starts = [0] + [e + 1 for e in ends[:-1]]
            for j, (s, e) in enumerate(zip(starts, ends)):
                pool_w[i, j, s:e + 1] = 1.0 / (e - s + 1)

        # ---- Kernel A: pooled turn states (blocked over batch) ----
        pooled = pool_turns(jnp.asarray(pool_w), encoder_output)   # (B, T, D) f32
        pooled_flat = pooled.reshape(bsz * T, D)
        # candidate half of con_fc: lane-sparse reduction -> compute in XLA
        # (fuses with the candidate gather below)
        tscore_flat = pooled_flat @ self.fc_w[0, H:] + self.fc_b[0]  # (B*T,)

        # ---- static index tables (replaces per-example slice/stack glue) ----
        # TODO(synk): index construction is driven by the Python list
        # his_turn_end_ids, so the forward is shape-specialized per turn layout;
        # an in-kernel scalar-prefetched gather (PrefetchScalarGridSpec) would
        # also remove the HBM-materialized gather intermediates.
        examples = []
        for i in range(bsz):
            L = turn_lengths[i]
            if L >= 3:
                for j in range(L - 2):
                    examples.append((i, j, L))
        N = len(examples)
        if N == 0:
            return jnp.zeros((), jnp.float32)
        n_pad = ((N + LANE - 1) // LANE) * LANE
        sub = _choose_sub(n_pad // LANE)
        cmax = max(L - (j + 2) for (_i, j, L) in examples)
        cmax_pad = max(8, ((cmax + 7) // 8) * 8)

        src0_idx = np.zeros((n_pad,), np.int32)
        src1_idx = np.zeros((n_pad,), np.int32)
        cand_idx = np.zeros((n_pad, cmax_pad), np.int32)
        cand_mask = np.full((n_pad, cmax_pad), NEG_INF, np.float32)
        valid = np.zeros((1, n_pad), np.float32)
        for n, (i, j, L) in enumerate(examples):
            src0_idx[n] = i * T + j
            src1_idx[n] = i * T + j + 1
            C = L - (j + 2)
            cand_idx[n, :C] = i * T + np.arange(j + 2, L, dtype=np.int32)
            cand_mask[n, :C] = 0.0
            valid[0, n] = 1.0

        # ---- vectorized gathers → transposed (lane-major) kernel inputs ----
        pooled_bf = pooled_flat.astype(jnp.bfloat16)   # bf16 MXU operands
        x0t = jnp.take(pooled_bf, jnp.asarray(src0_idx), axis=0).T  # (D, n_pad)
        x1t = jnp.take(pooled_bf, jnp.asarray(src1_idx), axis=0).T  # (D, n_pad)
        candT = (jnp.take(tscore_flat, jnp.asarray(cand_idx.reshape(-1)), axis=0)
                 .reshape(n_pad, cmax_pad)
                 + jnp.asarray(cand_mask)).T                        # (Cmax_pad, n_pad)

        # ---- Kernel B: batched LSTM + scoring + CE ----
        wih = self.w_ih.astype(jnp.bfloat16)              # (4H, E)
        whh = self.w_hh.astype(jnp.bfloat16)              # (4H, H)
        b = (self.b_ih + self.b_hh).reshape(4 * H, 1)     # f32
        wh = self.fc_w[:, :H].reshape(H, 1)               # w_h (lstm half), f32
        losses = dli_losses(x0t, x1t, candT, jnp.asarray(valid),
                            wih, whh, b, wh, hidden=H, sub=sub)     # (1, n_pad)
        return jnp.sum(losses) / N


# ------------------------------ numpy reference --------------------------------
def _sigmoid(x):
    return 1.0 / (1.0 + np.exp(-x))


def reference_loss(mod, enc, end_ids_list):
    enc = np.asarray(enc, np.float64)
    w_ih = np.asarray(mod.w_ih, np.float64)
    w_hh = np.asarray(mod.w_hh, np.float64)
    b = np.asarray(mod.b_ih, np.float64) + np.asarray(mod.b_hh, np.float64)
    fc_w = np.asarray(mod.fc_w, np.float64)[0]
    fc_b = float(np.asarray(mod.fc_b)[0])
    H = mod.lstm_hid
    bsz = enc.shape[0]
    turn_lengths = [len(e) for e in end_ids_list]
    T = max(turn_lengths)
    if T <= 2:
        return 0.0
    states = np.zeros((bsz, T, enc.shape[-1]))
    for i in range(bsz):
        ends = list(end_ids_list[i])
        starts = [0] + [e + 1 for e in ends[:-1]]
        for j, (s, e) in enumerate(zip(starts, ends)):
            states[i, j] = enc[i, s:e + 1].mean(axis=0)
    losses = []
    for i in range(bsz):
        L = turn_lengths[i]
        if L - 3 < 0:
            continue
        for j in range(L - 2):
            src = states[i, j:j + 2]
            cand = states[i, j + 2:L]
            h = np.zeros(H); c = np.zeros(H)
            for t in range(2):
                g = w_ih @ src[t] + w_hh @ h + b
                ii = _sigmoid(g[:H]); ff = _sigmoid(g[H:2 * H])
                gg = np.tanh(g[2 * H:3 * H]); oo = _sigmoid(g[3 * H:])
                c = ff * c + ii * gg
                h = oo * np.tanh(c)
            logits = np.array([fc_w @ np.concatenate([h, cand[k]]) + fc_b
                               for k in range(cand.shape[0])])
            m = logits.max()
            lse = m + np.log(np.exp(logits - m).sum())
            losses.append(lse - logits[0])
    return float(np.mean(losses))


if __name__ == "__main__":
    key = jax.random.PRNGKey(0)
    enc_dim, lstm_hid, ffn_hid_dim = 32, 16, 32
    bsz, seq_len = 2, 16
    k_enc, k_mod = jax.random.split(key)
    encoder_output = jax.random.normal(k_enc, (bsz, seq_len, enc_dim), jnp.float32)
    # deterministic history-turn end indices (turn counts 5 and 4 -> > 2)
    his_turn_end_ids = [[2, 5, 9, 13, 15], [3, 7, 11, 15]]

    mod = DLILoss2(enc_dim, lstm_hid, ffn_hid_dim, k_mod)
    loss = mod(encoder_output, his_turn_end_ids)
    loss = jax.block_until_ready(loss)

    ref = reference_loss(mod, encoder_output, his_turn_end_ids)
    assert np.isfinite(float(loss))
    assert abs(float(loss) - ref) < 1e-2, (float(loss), ref)
    print("KERNEL_OK")
</pallas_src>

<mosaic_0001>
module attributes {stable_mosaic.version = 11 : i64} {
  func.func @_pool_kernel(%arg0: i32, %arg1: memref<1x5x16xf32, #tpu.memory_space<vmem>>, %arg2: memref<1x16x32xf32, #tpu.memory_space<vmem>>, %arg3: memref<1x5x32xf32, #tpu.memory_space<vmem>>) attributes {dimension_semantics = [#tpu.dimension_semantics<parallel>], iteration_bounds = array<i64: 2>, scalar_prefetch = 0 : i64, scratch_operands = 0 : i64, tpu.core_type = #tpu.core_type<tc>, window_params = [{transform_indices = @transform_0, window_bounds = array<i64: 1, 5, 16>}, {transform_indices = @transform_1, window_bounds = array<i64: 1, 16, 32>}, {transform_indices = @transform_2, window_bounds = array<i64: 1, 5, 32>}]} {
    %c0 = arith.constant 0 : index
    %c0_0 = arith.constant 0 : index
    %c0_1 = arith.constant 0 : index
    %0 = vector.load %arg1[%c0, %c0_0, %c0_1] : memref<1x5x16xf32, #tpu.memory_space<vmem>>, vector<1x5x16xf32>
    %1 = vector.shape_cast %0 : vector<1x5x16xf32> to vector<5x16xf32>
    %c0_2 = arith.constant 0 : index
    %c0_3 = arith.constant 0 : index
    %c0_4 = arith.constant 0 : index
    %2 = vector.load %arg2[%c0_2, %c0_3, %c0_4] : memref<1x16x32xf32, #tpu.memory_space<vmem>>, vector<1x16x32xf32>
    %3 = vector.shape_cast %2 : vector<1x16x32xf32> to vector<16x32xf32>
    %cst = arith.constant dense<0.000000e+00> : vector<5x32xf32>
    %4 = tpu.matmul %1, %3, %cst {dimension_numbers = #tpu.dot_dimension_numbers<[1], [0], [0], [1], [0, 0, 1, 1], [], []>} : vector<5x16xf32>, vector<16x32xf32>, vector<5x32xf32> -> vector<5x32xf32>
    %c0_5 = arith.constant 0 : index
    %c0_6 = arith.constant 0 : index
    %c0_7 = arith.constant 0 : index
    %5 = vector.load %arg3[%c0_5, %c0_6, %c0_7] : memref<1x5x32xf32, #tpu.memory_space<vmem>>, vector<1x5x32xf32>
    %6 = vector.shape_cast %5 : vector<1x5x32xf32> to vector<5x32xf32>
    %7 = vector.shape_cast %4 : vector<5x32xf32> to vector<1x5x32xf32>
    tpu.vector_store %arg3[%c0_5, %c0_6, %c0_7], %7 {strides = array<i32>} : memref<1x5x32xf32, #tpu.memory_space<vmem>>, vector<1x5x32xf32>,
    return
  }
  func.func @transform_0(%arg0: i32) -> (i32, i32, i32) {
    %c0_i32 = arith.constant 0 : i32
    %c0_i32_0 = arith.constant 0 : i32
    %c0_i32_1 = arith.constant 0 : i32
    return %arg0, %c0_i32, %c0_i32_0 : i32, i32, i32
  }
  func.func @transform_1(%arg0: i32) -> (i32, i32, i32) {
    %c0_i32 = arith.constant 0 : i32
    %c0_i32_0 = arith.constant 0 : i32
    %c0_i32_1 = arith.constant 0 : i32
    return %arg0, %c0_i32, %c0_i32_0 : i32, i32, i32
  }
  func.func @transform_2(%arg0: i32) -> (i32, i32, i32) {
    %c0_i32 = arith.constant 0 : i32
    %c0_i32_0 = arith.constant 0 : i32
    %c0_i32_1 = arith.constant 0 : i32
    return %arg0, %c0_i32, %c0_i32_0 : i32, i32, i32
  }
}

</mosaic_0001>

<llo_original>
// kernel: tpu_custom_call.1
$region0: #{tpu_custom_call.1}
  #allocation0 [shape = 'u32[]', space=smem, size = 0x4, offset = 0x4, fixed_abs, tag = 'smem constant byte address 0x4 - core index']
  #allocation1 [shape = 'u32[72,128]{1,0:T(1,128)}', space=vmem, size = 0x9000, scoped, tag = 'internal scratch']
  %s0 = inlined_call_operand.vmem [shape: f32[2,5,16], index: 0, kind: input, shape index: {}]
  %s1 = inlined_call_operand.hbm [shape: f32[2,16,32], index: 1, kind: input, shape index: {}]
  %s2 = inlined_call_operand.vmem [shape: f32[2,5,32], index: 2, kind: output, shape index: {}]
  %s3 = sld [smem:[#allocation0]]
  $region45: #{tpu_custom_call.1} parent=0
    _
  %s5 = ssub.s32 1, %s3
  %s6 = scalar_select 0, %s5, %s3
  $region1: #{tpu_custom_call.1} parent=0
    #allocation2 [shape = 'u8[16384]{0}', space=vmem, size = 0x4000, scoped, tag = 'input window, operand 1']
    #allocation3 [shape = 's32[2]{0}', space=sflag, size = 0x8, scoped, tag = 'scoped memory for tpu_custom_call.1']
    %7 = vsyncpa [#allocation3], 0
    %s8 = scalar_lea.sflag [#allocation3], 1
    %9 = vsyncpa %s8, 0
    loop: start=0, step=1, limit=4
    $region2: #{tpu_custom_call.1} parent=1 // loop_pre_header
      _
    $region3: #{tpu_custom_call.1} parent=1 // loop_header
      %s11 = sphi 0, %s15
      %p12 = scmp.ge.s32.totalorder %s11, 4
      %s21 = sphi 0, %s23
      %s24 = sphi 0, %s21
      %s25 = sphi 0, %s24
      %s41 = sphi 0, %s25
      %s47 = sphi 0, %s49
      %s50 = sphi 0, %s47
      %s51 = sphi 0, %s50
      %s67 = sphi 0, %s51
      %s73 = sphi 0, %s75
      %s76 = sphi 0, %s73
      %s77 = sphi 0, %s76
      %s93 = sphi 0, %s77
    $region4: #{tpu_custom_call.1} parent=1 // loop_header_branch
      %14 = sbr.rel (%p12) target = $region8
    $region5: #{tpu_custom_call.1} parent=1 // loop_body
      %s16 = ssub.s32 %s11, 1
      %s17 = ssub.s32 %s11, 2
      %s18 = sadd.s32 %s11, 1
      %s19 = ssub.s32 %s11, %s18
      %p20 = scmp.eq.s32.totalorder %s19, 0
      %s22 = sadd.s32 %s21, 1
      %s23 = scalar_select %p20, %s21, %s22
      %p26 = pneg %p20
      %p27 = scmp.eq.s32.totalorder %s11, 1
      %p28 = por %p26, %p27
      %p29 = scmp.ne.s32.totalorder %s21, %s24
      %p30 = scmp.eq.s32.totalorder %s11, 0
      %p31 = por %p29, %p30
      %p32 = scmp.ne.s32.totalorder %s21, %s24
      %p33 = scmp.eq.s32.totalorder %s16, 1
      %p34 = por %p32, %p33
      %p35 = scmp.ne.s32.totalorder %s24, %s25
      %p36 = scmp.eq.s32.totalorder %s16, 0
      %p37 = por %p35, %p36
      %p38 = scmp.ne.s32.totalorder %s24, %s25
      %p39 = scmp.eq.s32.totalorder %s17, 1
      %p40 = por %p38, %p39
      %p42 = scmp.ne.s32.totalorder %s25, %s41
      %p43 = scmp.eq.s32.totalorder %s17, 0
      %p44 = por %p42, %p43
      %s45 = ssub.s32 %s11, %s18
      %p46 = scmp.eq.s32.totalorder %s45, 0
      %s48 = sadd.s32 %s47, 1
      %s49 = scalar_select %p46, %s47, %s48
      %p52 = pneg %p46
      %p53 = scmp.eq.s32.totalorder %s11, 1
      %p54 = por %p52, %p53
      %p55 = scmp.ne.s32.totalorder %s47, %s50
      %p56 = scmp.eq.s32.totalorder %s11, 0
      %p57 = por %p55, %p56
      %p58 = scmp.ne.s32.totalorder %s47, %s50
      %p59 = scmp.eq.s32.totalorder %s16, 1
      %p60 = por %p58, %p59
      %p61 = scmp.ne.s32.totalorder %s50, %s51
      %p62 = scmp.eq.s32.totalorder %s16, 0
      %p63 = por %p61, %p62
      %p64 = scmp.ne.s32.totalorder %s50, %s51
      %p65 = scmp.eq.s32.totalorder %s17, 1
      %p66 = por %p64, %p65
      %p68 = scmp.ne.s32.totalorder %s51, %s67
      %p69 = scmp.eq.s32.totalorder %s17, 0
      %p70 = por %p68, %p69
      %s71 = ssub.s32 %s11, %s18
      %p72 = scmp.eq.s32.totalorder %s71, 0
      %s74 = sadd.s32 %s73, 1
      %s75 = scalar_select %p72, %s73, %s74
      %p78 = pneg %p72
      %p79 = scmp.eq.s32.totalorder %s11, 1
      %p80 = por %p78, %p79
      %p81 = scmp.ne.s32.totalorder %s73, %s76
      %p82 = scmp.eq.s32.totalorder %s11, 0
      %p83 = por %p81, %p82
      %p84 = scmp.ne.s32.totalorder %s73, %s76
      %p85 = scmp.eq.s32.totalorder %s16, 1
      %p86 = por %p84, %p85
      %p87 = scmp.ne.s32.totalorder %s76, %s77
      %p88 = scmp.eq.s32.totalorder %s16, 0
      %p89 = por %p87, %p88
      %p90 = scmp.ne.s32.totalorder %s76, %s77
      %p91 = scmp.eq.s32.totalorder %s17, 1
      %p92 = por %p90, %p91
      %p94 = scmp.ne.s32.totalorder %s77, %s93
      %p95 = scmp.eq.s32.totalorder %s17, 0
      %p96 = por %p94, %p95
      %p97 = scmp.le.s32.totalorder 1, %s11
      %p98 = scmp.lt.s32.totalorder %s11, 3
      %p99 = pnand %p97, %p98
      %p100 = pneg %p99
      // Predicated region
      $region9: #{tpu_custom_call.1} parent=5 // pred_check
        _
      $region10: #{tpu_custom_call.1} parent=5 // pred_check_branch
        %102 = sbr.rel (%p99) target = $region12
      $region11: #{tpu_custom_call.1} parent=5 // pred_region
        %s103 = ssub.s32 %s11, 1
      $region12: #{tpu_custom_call.1} parent=5 // pred_fallthru
        _
      %p104 = scmp.lt.s32.totalorder %s11, 2
      // Predicated region
      $region13: #{tpu_custom_call.1} parent=5 // pred_check
        %p105 = pneg %p104
      $region14: #{tpu_custom_call.1} parent=5 // pred_check_branch
        %107 = sbr.rel (%p105) target = $region16
      $region15: #{tpu_custom_call.1} parent=5 // pred_region
        // Predicated region
        $region17: #{tpu_custom_call.1} parent=15 // pred_check
          %p108 = pneg %p31
        $region18: #{tpu_custom_call.1} parent=15 // pred_check_branch
          %110 = sbr.rel (%p108) target = $region20
        $region19: #{tpu_custom_call.1} parent=15 // pred_region
          %p111 = scmp.lt.s32.totalorder %s11, 1
          %s112 = scalar_select %p111, %s11, 1
          %s113 = smul.addr %s112, 8
          %s114 = scalar_lea.vmem %s0, %s113
        $region20: #{tpu_custom_call.1} parent=15 // pred_fallthru
          _
        // Predicated region
        $region21: #{tpu_custom_call.1} parent=15 // pred_check
          %p115 = pneg %p57
        $region22: #{tpu_custom_call.1} parent=15 // pred_check_branch
          %117 = sbr.rel (%p115) target = $region24
        $region23: #{tpu_custom_call.1} parent=15 // pred_region
          %s118 = sand.u32 %s47, 1
          %s119 = scalar_lea.sflag [#allocation3], %s118
          %s120 = sand.u32 %s47, 1
          %s121 = smul.addr %s120, 16
          %s122 = scalar_lea.vmem [#allocation2], %s121
          %124 = vsyncadd %s119, 0
          %s125 = smul.addr %s11, 2
          %s126 = smul.addr %s125, 8
          %s127 = scalar_lea.hbm %s1, %s126
          %s128 = sshll.u32 %s127, 4
          %s129 = int_to_ptr.hbm [resolvable:$true] %s128
          %s130 = sshll.u32 %s122, 4
          %s131 = int_to_ptr.vmem [resolvable:$true] %s130
          %136 = dma.hbm_to_vmem [thread:$0]  %s129, 256, %s131, %s119, 128, 128, 8
        $region24: #{tpu_custom_call.1} parent=15 // pred_fallthru
          _
      $region16: #{tpu_custom_call.1} parent=5 // pred_fallthru
        _
      %p137 = scmp.le.s32.totalorder 1, %s11
      %p138 = scmp.lt.s32.totalorder %s11, 3
      %p139 = pnand %p137, %p138
      %p140 = pneg %p139
      // Predicated region
      $region25: #{tpu_custom_call.1} parent=5 // pred_check
        _
      $region26: #{tpu_custom_call.1} parent=5 // pred_check_branch
        %142 = sbr.rel (%p139) target = $region28
      $region27: #{tpu_custom_call.1} parent=5 // pred_region
        %s143 = ssub.s32 %s11, 1
        %s144 = sand.u32 %s50, 1
        %s145 = scalar_lea.sflag [#allocation3], %s144
        %s146 = sand.u32 %s50, 1
        %s147 = smul.addr %s146, 16
        %s148 = scalar_lea.vmem [#allocation2], %s147
        // Predicated region
        $region29: #{tpu_custom_call.1} parent=27 // pred_check
          %p149 = pneg %p63
        $region30: #{tpu_custom_call.1} parent=27 // pred_check_branch
          %151 = sbr.rel (%p149) target = $region32
        $region31: #{tpu_custom_call.1} parent=27 // pred_region
          %153 = dma.done %s145, 256
        $region32: #{tpu_custom_call.1} parent=27 // pred_fallthru
          _
        %p154 = scmp.lt.s32.totalorder %s16, 1
        %s155 = scalar_select %p154, %s16, 1
        %s156 = smul.addr %s155, 8
        %s157 = scalar_lea.vmem %s0, %s156
        %p158 = pneg %p37
        %p159 = pneg %p34
        %s160 = sand.u32 %s50, 1
        %s161 = scalar_lea.sflag [#allocation3], %s160
        %s162 = sand.u32 %s50, 1
        %s163 = smul.addr %s162, 16
        %s164 = scalar_lea.vmem [#allocation2], %s163
        %p165 = pneg %p63
        %p166 = pneg %p60
        %p167 = pneg %p89
        %p168 = pneg %p86
        %p169 = scmp.lt.s32.totalorder %s16, 1
        %s170 = scalar_select %p169, %s16, 1
        %s171 = smul.addr %s170, 8
        %s172 = scalar_lea.vmem %s2, %s171
        %p173 = scmp.lt.s32.totalorder %s16, 1
        %s174 = scalar_select %p173, %s16, 1
        %s175 = smul.addr %s174, 8
        %s176 = scalar_lea.vmem %s0, %s175
        %p177 = scmp.lt.s32.totalorder %s16, 1
        %s178 = scalar_select %p177, %s16, 1
        %s179 = smul.addr %s178, 8
        %s180 = scalar_lea.vmem %s2, %s179
        %v181 = vld [vmem:[%s176] sm:$0x1f]
        %v182 = vld [vmem:[%s148] sm:$0xff]
        %v183 = vld [vmem:[%s148 + $0x8] sm:$0xff]
        %vm184 = vcmask 130048
        %v186 = vsel %vm184, %v181, 0
        %188 = vmatpush.msra.mxu0 0.0
        %189 = vmatpush.msra.mxu0 0.0
        %190 = vmatpush.msra.mxu0 0.0
        %191 = vmatpush.msra.mxu0 0.0
        %192 = vmatpush.msra.mxu0 0.0
        %193 = vmatpush.msra.mxu0 0.0
        %194 = vmatpush.msra.mxu0 0.0
        %195 = vmatpush.msra.mxu0 0.0
        %196 = vmatpush.msra.mxu0 0.0
        %197 = vmatpush.msra.mxu0 0.0
        %198 = vmatpush.msra.mxu0 0.0
        %199 = vmatpush.msra.mxu0 0.0
        %200 = vmatpush.msra.mxu0 0.0
        %201 = vmatpush.msra.mxu0 0.0
        %202 = vmatpush.msra.mxu0 %v183
        %203 = vmatpush.msra.mxu0 %v182
        %204 = vmatmul.f32.gmra.mxu0 %v186
        %v205 = vpop.f32.mrf.mxu0
        %v206 = vadd.f32 0.0, %v205
        %207 = vdwg.mxu0
        %vm208 = vcmask 258048
        %209 = vst.msk [vmem:[%s180] sm:$0x1f] %vm208, %v206
        %p210 = scmp.lt.s32.totalorder %s16, 1
        %s211 = scalar_select %p210, %s16, 1
        %s212 = smul.addr %s211, 8
        %s213 = scalar_lea.vmem %s2, %s212
        // Predicated region
        $region33: #{tpu_custom_call.1} parent=27 // pred_check
          %p214 = pneg %p86
        $region34: #{tpu_custom_call.1} parent=27 // pred_check_branch
          %216 = sbr.rel (%p214) target = $region36
        $region35: #{tpu_custom_call.1} parent=27 // pred_region
          _
        $region36: #{tpu_custom_call.1} parent=27 // pred_fallthru
          _
      $region28: #{tpu_custom_call.1} parent=5 // pred_fallthru
        _
      %p217 = scmp.le.s32.totalorder 2, %s11
      // Predicated region
      $region37: #{tpu_custom_call.1} parent=5 // pred_check
        %p218 = pneg %p217
      $region38: #{tpu_custom_call.1} parent=5 // pred_check_branch
        %220 = sbr.rel (%p218) target = $region40
      $region39: #{tpu_custom_call.1} parent=5 // pred_region
        %s221 = ssub.s32 %s11, 2
        // Predicated region
        $region41: #{tpu_custom_call.1} parent=39 // pred_check
          %p222 = pneg %p92
        $region42: #{tpu_custom_call.1} parent=39 // pred_check_branch
          %224 = sbr.rel (%p222) target = $region44
        $region43: #{tpu_custom_call.1} parent=39 // pred_region
          %p225 = scmp.lt.s32.totalorder %s17, 1
          %s226 = scalar_select %p225, %s17, 1
          %s227 = smul.addr %s226, 8
          %s228 = scalar_lea.vmem %s2, %s227
        $region44: #{tpu_custom_call.1} parent=39 // pred_fallthru
          _
      $region40: #{tpu_custom_call.1} parent=5 // pred_fallthru
        _
    $region6: #{tpu_custom_call.1} parent=1 // loop_footer
      %s15 = sadd.s32 1, %s11
    $region7: #{tpu_custom_call.1} parent=1 // loop_footer_branch
      %10 = sbr.rel target = $region3
    $region8: #{tpu_custom_call.1} parent=1 // loop_exit
      _
    %229 = vsyncpa [#allocation3], 1
    %s230 = scalar_lea.sflag [#allocation3], 1
    %231 = vsyncpa %s230, 1

</llo_original>
